<compile_context>
chip_gen: v5e
topology: v5e:2x2
jax: 0.10.0
libtpu: 0.0.40
codegen_flags: <defaults>
</compile_context>

<pallas_src>
import functools

import jax
import jax.numpy as jnp
from jax.experimental import pallas as pl
from jax.experimental.pallas import tpu as pltpu

LANES = 128   # vreg lane width; also 4*H for H=32
BP = 8        # padded batch (f32 sublane tile height)


def _round_up(n, m):
    return ((n + m - 1) // m) * m


def _reorder_gates(a, H):
    """Repack the last (4H) axis from PyTorch's [i, f, g, o] to [i, o, g, o].

    The forget gate is dead (c0 == 0, single timestep); duplicating o at lane
    blocks H:2H and 3H:4H makes the in-kernel roll-by-H alignment of o exact
    for either hardware rotate direction.
    """
    return jnp.concatenate(
        [a[..., 0 * H:1 * H], a[..., 3 * H:4 * H],
         a[..., 2 * H:3 * H], a[..., 3 * H:4 * H]], axis=-1)


def pack_params(params, *, num_layers, hidden_size, input_size, num_classes):
    """Pack all live parameters into one lane-aligned (R, 128) f32 slab.

    Layout (row offsets are static Python ints, all multiples of 8):
      per layer l: w_ih_l{l}.T with gate cols [i|o|g|o]
                     (rows padded to 128 for l >= 1 so a full-width hidden
                      vector can be fed straight in; padding rows are zero)
                   fused bias (b_ih + b_hh), gate cols [i|o|g|o],
                     replicated to 8 rows
      then:        w_out.T  (rows padded to 128, zero beyond H; cols zero beyond C)
                   b_out    replicated to 8 rows (cols zero beyond C)
    w_hh / w_attn / b_attn are dead for seq_len == 1 with zero state and are
    intentionally NOT packed (no DMA for them at all).
    """
    H = hidden_size
    assert 4 * H == LANES, "lane-roll gate packing assumes 4*hidden_size == 128"
    blocks, offsets = [], {}
    row = 0

    def add(name, arr, pad_rows=None):
        nonlocal row
        arr = jnp.asarray(arr, jnp.float32)
        r, c = arr.shape
        r_pad = _round_up(r if pad_rows is None else pad_rows, 8)
        buf = jnp.zeros((r_pad, LANES), jnp.float32).at[:r, :c].set(arr)
        offsets[name] = row
        blocks.append(buf)
        row += r_pad

    for l in range(num_layers):
        w = _reorder_gates(params[f"w_ih_l{l}"].T, H)                        # (in_l, 4H)
        b = _reorder_gates((params[f"b_ih_l{l}"] + params[f"b_hh_l{l}"])[None, :], H)
        add(f"w_{l}", w, pad_rows=(None if l == 0 else LANES))
        add(f"b_{l}", jnp.tile(b, (BP, 1)))                                  # (8, 4H)
    add("w_out", params["w_out"].T, pad_rows=LANES)                          # (H, C) in rows 0:H
    add("b_out", jnp.tile(params["b_out"][None, :], (BP, 1)))                # (8, C)

    return jnp.concatenate(blocks, axis=0), offsets


def _vra_kernel(num_layers, hidden_size, input_size, offsets,
                x_ref, p_ref, out_ref):
    """Whole forward pass in one kernel invocation (no grid)."""
    H = hidden_size

    h = x_ref[...]                                    # (BP, input_size), f32
    in_rows = input_size
    for l in range(num_layers):
        wo = offsets[f"w_{l}"]
        bo = offsets[f"b_{l}"]
        w = p_ref[wo:wo + in_rows, :]                 # (in_rows, 128)
        b = p_ref[bo:bo + BP, :]                      # (8, 128) pre-replicated bias
        # TODO(synk): benchmark a VPU (sublane-broadcast + vmul/vadd) variant
        # of this tiny matmul against the MXU round trip; keep whichever wins.
        gates = jnp.dot(h, w, preferred_element_type=jnp.float32) + b        # [i|o|g|o]

        sg = jax.nn.sigmoid(gates)                    # i @ 0:H ; o @ H:2H and 3H:4H
        tg = jnp.tanh(gates)                          # g @ 2H:3H
        g_al = pltpu.roll(tg, shift=2 * H, axis=1)    # half-rotation: g -> lanes 0:H
        o_al = pltpu.roll(sg, shift=H, axis=1)        # o (duplicated) -> lanes 0:H
        c = sg * g_al                                 # lanes 0:H hold i*g
        h = o_al * jnp.tanh(c)                        # lanes 0:H hold h; rest bounded junk
        in_rows = LANES                               # next layer consumes full-width h
                                                      # (its weight rows H:128 are zero)

    # Attention over a length-1 sequence is the identity: attn_out == h.
    wo = offsets["w_out"]
    bo = offsets["b_out"]
    y = jnp.dot(h, p_ref[wo:wo + LANES, :], preferred_element_type=jnp.float32)
    # Full-width lane-dense store; columns >= num_classes are exactly zero.
    out_ref[...] = y + p_ref[bo:bo + BP, :]


def make_forward(*, batch, num_layers, hidden_size, input_size, num_classes, offsets):
    assert batch <= BP
    kernel = functools.partial(_vra_kernel, num_layers, hidden_size, input_size, offsets)
    call = pl.pallas_call(
        kernel,
        out_shape=jax.ShapeDtypeStruct((BP, LANES), jnp.float32),
        in_specs=[pl.BlockSpec(memory_space=pltpu.MemorySpace.VMEM),   # x (padded)
                  pl.BlockSpec(memory_space=pltpu.MemorySpace.VMEM)],  # packed params
        out_specs=pl.BlockSpec(memory_space=pltpu.MemorySpace.VMEM),
    )

    @jax.jit
    def forward(x, packed):
        # The kernel's dead-code removals (no W_hh term, no forget-gate path,
        # attention == identity) are valid exactly because the module reshapes
        # a 2-D (B, F) input to (B, 1, F) with zero initial state.  Fail loudly
        # if that assumption ever changes.
        assert x.ndim == 2 and x.shape == (batch, input_size), x.shape
        xp = jnp.zeros((BP, input_size), jnp.float32).at[:batch, :].set(
            x.astype(jnp.float32))
        y = call(xp, packed)
        return y[:batch, :num_classes]    # pad rows/cols sliced off by XLA (fuses)

    return forward


def _ref_forward(x, params, *, num_layers, hidden_size):
    """Pure-JAX reference with the FULL module math (W_hh, forget gate, c_prev,
    attention Linear, softmax) to verify the kernel's eliminations are exact."""
    H = hidden_size
    B = x.shape[0]
    layer_in = x.astype(jnp.float32)                  # the single timestep
    for l in range(num_layers):
        wih, whh = params[f"w_ih_l{l}"], params[f"w_hh_l{l}"]
        bih, bhh = params[f"b_ih_l{l}"], params[f"b_hh_l{l}"]
        h_prev = jnp.zeros((B, H), jnp.float32)
        c_prev = jnp.zeros((B, H), jnp.float32)
        gates = layer_in @ wih.T + bih + h_prev @ whh.T + bhh
        i = jax.nn.sigmoid(gates[:, 0 * H:1 * H])
        f = jax.nn.sigmoid(gates[:, 1 * H:2 * H])
        g = jnp.tanh(gates[:, 2 * H:3 * H])
        o = jax.nn.sigmoid(gates[:, 3 * H:4 * H])
        c = f * c_prev + i * g
        layer_in = o * jnp.tanh(c)
    out = layer_in[:, None, :]                                   # (B, 1, H)
    scores = out @ params["w_attn"].T + params["b_attn"]
    weights = jax.nn.softmax(scores, axis=1)                     # seq axis, len 1
    attn_out = jnp.sum(weights * out, axis=1)
    return attn_out @ params["w_out"].T + params["b_out"]


def _init_params(key, input_size, hidden_size, num_layers, num_classes):
    """Deterministic init mimicking PyTorch default uniform(-1/sqrt(H), 1/sqrt(H))."""
    H = hidden_size
    bound = 1.0 / jnp.sqrt(jnp.float32(H))
    params = {}
    for l in range(num_layers):
        in_l = input_size if l == 0 else H
        key, k1, k2, k3, k4 = jax.random.split(key, 5)
        params[f"w_ih_l{l}"] = jax.random.uniform(k1, (4 * H, in_l), jnp.float32, -bound, bound)
        params[f"w_hh_l{l}"] = jax.random.uniform(k2, (4 * H, H), jnp.float32, -bound, bound)
        params[f"b_ih_l{l}"] = jax.random.uniform(k3, (4 * H,), jnp.float32, -bound, bound)
        params[f"b_hh_l{l}"] = jax.random.uniform(k4, (4 * H,), jnp.float32, -bound, bound)
    key, k1, k2, k3, k4 = jax.random.split(key, 5)
    params["w_attn"] = jax.random.uniform(k1, (H, H), jnp.float32, -bound, bound)
    params["b_attn"] = jax.random.uniform(k2, (H,), jnp.float32, -bound, bound)
    params["w_out"] = jax.random.uniform(k3, (num_classes, H), jnp.float32, -bound, bound)
    params["b_out"] = jax.random.uniform(k4, (num_classes,), jnp.float32, -bound, bound)
    return params


if __name__ == "__main__":
    B, INPUT_SIZE, HIDDEN, NUM_LAYERS, NUM_CLASSES = 2, 16, 32, 2, 8
    # dropout=0.0 in the module -> no-op in the forward pass; nothing to implement.

    key = jax.random.PRNGKey(0)
    key, kx = jax.random.split(key)
    x = jax.random.normal(kx, (B, INPUT_SIZE), jnp.float32)
    params = _init_params(key, INPUT_SIZE, HIDDEN, NUM_LAYERS, NUM_CLASSES)

    # One-time (per-model) packing: single lane-aligned f32 slab, static offsets.
    packed, offsets = pack_params(params, num_layers=NUM_LAYERS, hidden_size=HIDDEN,
                                  input_size=INPUT_SIZE, num_classes=NUM_CLASSES)
    packed = jax.block_until_ready(packed)

    forward = make_forward(batch=B, num_layers=NUM_LAYERS, hidden_size=HIDDEN,
                           input_size=INPUT_SIZE, num_classes=NUM_CLASSES,
                           offsets=offsets)

    out = forward(x, packed)
    out = jax.block_until_ready(out)

    ref = _ref_forward(x, params, num_layers=NUM_LAYERS, hidden_size=HIDDEN)
    assert out.shape == (B, NUM_CLASSES)
    assert jnp.allclose(out, ref, atol=1e-5, rtol=1e-5), (out, ref)

    print("KERNEL_OK")
</pallas_src>

<mosaic_0001>
module attributes {stable_mosaic.version = 11 : i64} {
  func.func @_vra_kernel(%arg0: memref<8x16xf32, #tpu.memory_space<vmem>>, %arg1: memref<296x128xf32, #tpu.memory_space<vmem>>, %arg2: memref<8x128xf32, #tpu.memory_space<vmem>>) attributes {dimension_semantics = [], scalar_prefetch = 0 : i64, scratch_operands = 0 : i64, tpu.core_type = #tpu.core_type<tc>} {
    %c0 = arith.constant 0 : index
    %c0_0 = arith.constant 0 : index
    %0 = vector.load %arg0[%c0, %c0_0] : memref<8x16xf32, #tpu.memory_space<vmem>>, vector<8x16xf32>
    %c0_1 = arith.constant 0 : index
    %c0_2 = arith.constant 0 : index
    %1 = vector.load %arg1[%c0_1, %c0_2] : memref<296x128xf32, #tpu.memory_space<vmem>>, vector<16x128xf32>
    %c16 = arith.constant 16 : index
    %c0_3 = arith.constant 0 : index
    %2 = vector.load %arg1[%c16, %c0_3] : memref<296x128xf32, #tpu.memory_space<vmem>>, vector<8x128xf32>
    %cst = arith.constant dense<0.000000e+00> : vector<8x128xf32>
    %3 = tpu.matmul %0, %1, %cst {dimension_numbers = #tpu.dot_dimension_numbers<[1], [0], [0], [1], [0, 0, 1, 1], [], []>} : vector<8x16xf32>, vector<16x128xf32>, vector<8x128xf32> -> vector<8x128xf32>
    %4 = arith.addf %3, %2 : vector<8x128xf32>
    %5 = arith.negf %4 : vector<8x128xf32>
    %6 = math.exp %5 : vector<8x128xf32>
    %cst_4 = arith.constant 1.000000e+00 : f32
    %7 = vector.broadcast %cst_4 : f32 to vector<8x128xf32>
    %8 = arith.addf %7, %6 : vector<8x128xf32>
    %9 = arith.divf %7, %8 : vector<8x128xf32>
    %10 = math.tanh %4 : vector<8x128xf32>
    %c64_i32 = arith.constant 64 : i32
    %11 = tpu.dynamic_rotate %10 by %c64_i32 dim 1 : vector<8x128xf32>, i32 -> vector<8x128xf32>
    %c32_i32 = arith.constant 32 : i32
    %12 = tpu.dynamic_rotate %9 by %c32_i32 dim 1 : vector<8x128xf32>, i32 -> vector<8x128xf32>
    %13 = arith.mulf %9, %11 : vector<8x128xf32>
    %14 = math.tanh %13 : vector<8x128xf32>
    %15 = arith.mulf %12, %14 : vector<8x128xf32>
    %c24 = arith.constant 24 : index
    %c0_5 = arith.constant 0 : index
    %16 = vector.load %arg1[%c24, %c0_5] : memref<296x128xf32, #tpu.memory_space<vmem>>, vector<128x128xf32>
    %c152 = arith.constant 152 : index
    %c0_6 = arith.constant 0 : index
    %17 = vector.load %arg1[%c152, %c0_6] : memref<296x128xf32, #tpu.memory_space<vmem>>, vector<8x128xf32>
    %cst_7 = arith.constant dense<0.000000e+00> : vector<8x128xf32>
    %18 = tpu.matmul %15, %16, %cst_7 {dimension_numbers = #tpu.dot_dimension_numbers<[1], [0], [0], [1], [0, 0, 1, 1], [], []>} : vector<8x128xf32>, vector<128x128xf32>, vector<8x128xf32> -> vector<8x128xf32>
    %19 = arith.addf %18, %17 : vector<8x128xf32>
    %20 = arith.negf %19 : vector<8x128xf32>
    %21 = math.exp %20 : vector<8x128xf32>
    %cst_8 = arith.constant 1.000000e+00 : f32
    %22 = vector.broadcast %cst_8 : f32 to vector<8x128xf32>
    %23 = arith.addf %22, %21 : vector<8x128xf32>
    %24 = arith.divf %22, %23 : vector<8x128xf32>
    %25 = math.tanh %19 : vector<8x128xf32>
    %c64_i32_9 = arith.constant 64 : i32
    %26 = tpu.dynamic_rotate %25 by %c64_i32_9 dim 1 : vector<8x128xf32>, i32 -> vector<8x128xf32>
    %c32_i32_10 = arith.constant 32 : i32
    %27 = tpu.dynamic_rotate %24 by %c32_i32_10 dim 1 : vector<8x128xf32>, i32 -> vector<8x128xf32>
    %28 = arith.mulf %24, %26 : vector<8x128xf32>
    %29 = math.tanh %28 : vector<8x128xf32>
    %30 = arith.mulf %27, %29 : vector<8x128xf32>
    %c160 = arith.constant 160 : index
    %c0_11 = arith.constant 0 : index
    %31 = vector.load %arg1[%c160, %c0_11] : memref<296x128xf32, #tpu.memory_space<vmem>>, vector<128x128xf32>
    %cst_12 = arith.constant dense<0.000000e+00> : vector<8x128xf32>
    %32 = tpu.matmul %30, %31, %cst_12 {dimension_numbers = #tpu.dot_dimension_numbers<[1], [0], [0], [1], [0, 0, 1, 1], [], []>} : vector<8x128xf32>, vector<128x128xf32>, vector<8x128xf32> -> vector<8x128xf32>
    %c288 = arith.constant 288 : index
    %c0_13 = arith.constant 0 : index
    %33 = vector.load %arg1[%c288, %c0_13] : memref<296x128xf32, #tpu.memory_space<vmem>>, vector<8x128xf32>
    %34 = arith.addf %32, %33 : vector<8x128xf32>
    %c0_14 = arith.constant 0 : index
    %c0_15 = arith.constant 0 : index
    %35 = vector.load %arg2[%c0_14, %c0_15] : memref<8x128xf32, #tpu.memory_space<vmem>>, vector<8x128xf32>
    tpu.vector_store %arg2[%c0_14, %c0_15], %34 {strides = array<i32>} : memref<8x128xf32, #tpu.memory_space<vmem>>, vector<8x128xf32>,
    return
  }
}

</mosaic_0001>

<llo_original>
// kernel: forward.1
$region0: #{forward.1}
  #allocation0 [shape = 'u32[]', space=smem, size = 0x4, offset = 0x4, fixed_abs, tag = 'smem constant byte address 0x4 - core index']
  #allocation1 [shape = 'u32[72,128]{1,0:T(1,128)}', space=vmem, size = 0x9000, scoped, tag = 'internal scratch']
  %s0 = inlined_call_operand.vmem [shape: f32[8,16], index: 0, kind: input, shape index: {}]
  %s1 = inlined_call_operand.hbm [shape: f32[296,128], index: 1, kind: input, shape index: {}]
  %s2 = inlined_call_operand.vmem [shape: f32[8,128], index: 2, kind: output, shape index: {}]
  %s3 = sld [smem:[#allocation0]]
  $region22: #{forward.1} parent=0
    _
  %s5 = ssub.s32 1, %s3
  %s6 = scalar_select 0, %s5, %s3
  $region1: #{forward.1} parent=0
    #allocation2 [shape = 'u8[151552]{0}', space=vmem, size = 0x25000, scoped, tag = 'input window, operand 1, single buffered']
    #allocation3 [shape = 's32[1]{0}', space=sflag, size = 0x4, scoped, tag = 'scoped memory for forward.1']
    %7 = vsyncpa [#allocation3], 0
    // Predicated region
    $region2: #{forward.1} parent=1 // pred_check
      _
    $region3: #{forward.1} parent=1 // pred_check_branch
      %9 = sbr.rel (0) target = $region5
    $region4: #{forward.1} parent=1 // pred_region
      _
    $region5: #{forward.1} parent=1 // pred_fallthru
      _
    // Predicated region
    $region6: #{forward.1} parent=1 // pred_check
      _
    $region7: #{forward.1} parent=1 // pred_check_branch
      %11 = sbr.rel (0) target = $region9
    $region8: #{forward.1} parent=1 // pred_region
      %13 = vsyncadd [#allocation3], 0
      %s14 = sshll.u32 %s1, 4
      %s15 = int_to_ptr.hbm [resolvable:$true] %s14
      %s16 = sshll.u32 [#allocation2], 4
      %s17 = int_to_ptr.vmem [resolvable:$true] %s16
      %22 = dma.hbm_to_vmem [thread:$0]  %s15, 4736, %s17, [#allocation3], 128, 128, 8
    $region9: #{forward.1} parent=1 // pred_fallthru
      _
    // Predicated region
    $region10: #{forward.1} parent=1 // pred_check
      _
    $region11: #{forward.1} parent=1 // pred_check_branch
      %24 = sbr.rel (0) target = $region13
    $region12: #{forward.1} parent=1 // pred_region
      %26 = dma.done [#allocation3], 4736
    $region13: #{forward.1} parent=1 // pred_fallthru
      _
    %v27 = vld [vmem:[%s0] sm:$0xff]
    %v28 = vld [vmem:[#allocation2] sm:$0xff]
    %v29 = vld [vmem:[#allocation2 + $0x8] sm:$0xff]
    %v30 = vld [vmem:[#allocation2 + $0x10] sm:$0xff]
    %vm31 = vcmask 130048
    %v33 = vsel %vm31, %v27, 0
    %35 = vmatpush.msra.mxu0 0.0
    %36 = vmatpush.msra.mxu0 0.0
    %37 = vmatpush.msra.mxu0 0.0
    %38 = vmatpush.msra.mxu0 0.0
    %39 = vmatpush.msra.mxu0 0.0
    %40 = vmatpush.msra.mxu0 0.0
    %41 = vmatpush.msra.mxu0 0.0
    %42 = vmatpush.msra.mxu0 0.0
    %43 = vmatpush.msra.mxu0 0.0
    %44 = vmatpush.msra.mxu0 0.0
    %45 = vmatpush.msra.mxu0 0.0
    %46 = vmatpush.msra.mxu0 0.0
    %47 = vmatpush.msra.mxu0 0.0
    %48 = vmatpush.msra.mxu0 0.0
    %49 = vmatpush.msra.mxu0 %v29
    %50 = vmatpush.msra.mxu0 %v28
    %51 = vmatmul.f32.gmra.mxu0 %v33
    %v52 = vpop.f32.mrf.mxu0
    %v53 = vadd.f32 %v30, %v52
    %54 = vdwg.mxu0
    %v55 = vxor.u32 %v53, 2147483648
    %v56 = vmul.f32 %v55, 1.442695
    %v57 = vpow.pop %v56
    %v58 = vadd.f32 %v57, 1.0
    %v59 = vrcp.pop %v58
    %v60 = vmul.f32 %v58, %v59
    %v61 = vsub.f32 1.0, %v60
    %v62 = vmul.f32 %v59, %v61
    %v63 = vadd.f32 %v59, %v62
    %vm64 = vweird.f32 %v58
    %vm65 = vweird.f32 %v59
    %vm66 = vmor %vm64, %vm65
    %v67 = vsel %vm66, %v59, %v63
    %v68 = vand.u32 2147483647, %v58
    %vm69 = vcmp.eq.f32.partialorder %v68, 8.507059e+37
    %v70 = vand.u32 %v58, 2147483648
    %v71 = vor.u32 1.1754944e-38, %v70
    %v72 = vsel %vm69, %v71, %v67
    %v73 = vmul.f32 1.0, %v72
    %v74 = vtanh.pop %v53
    %75 = vrot.lane.b32.xlu0 %v74, 64
    %v76 = vpop.permute.xlu0 %75
    %77 = vrot.lane.b32.xlu0 %v73, 32
    %v78 = vpop.permute.xlu0 %77
    %v79 = vmul.f32 %v73, %v76
    %v80 = vtanh.pop %v79
    %v81 = vmul.f32 %v78, %v80
    %v82 = vld [vmem:[#allocation2 + $0x18] sm:$0xff]
    %v83 = vld [vmem:[#allocation2 + $0x20] sm:$0xff]
    %v84 = vld [vmem:[#allocation2 + $0x28] sm:$0xff]
    %v85 = vld [vmem:[#allocation2 + $0x30] sm:$0xff]
    %v86 = vld [vmem:[#allocation2 + $0x38] sm:$0xff]
    %v87 = vld [vmem:[#allocation2 + $0x40] sm:$0xff]
    %v88 = vld [vmem:[#allocation2 + $0x48] sm:$0xff]
    %v89 = vld [vmem:[#allocation2 + $0x50] sm:$0xff]
    %v90 = vld [vmem:[#allocation2 + $0x58] sm:$0xff]
    %v91 = vld [vmem:[#allocation2 + $0x60] sm:$0xff]
    %v92 = vld [vmem:[#allocation2 + $0x68] sm:$0xff]
    %v93 = vld [vmem:[#allocation2 + $0x70] sm:$0xff]
    %v94 = vld [vmem:[#allocation2 + $0x78] sm:$0xff]
    %v95 = vld [vmem:[#allocation2 + $0x80] sm:$0xff]
    %v96 = vld [vmem:[#allocation2 + $0x88] sm:$0xff]
    %v97 = vld [vmem:[#allocation2 + $0x90] sm:$0xff]
    %v98 = vld [vmem:[#allocation2 + $0x98] sm:$0xff]
    %99 = vmatpush.msra.mxu0 %v97
    %100 = vmatpush.msra.mxu0 %v96
    %101 = vmatpush.msra.mxu0 %v95
    %102 = vmatpush.msra.mxu0 %v94
    %103 = vmatpush.msra.mxu0 %v93
    %104 = vmatpush.msra.mxu0 %v92
    %105 = vmatpush.msra.mxu0 %v91
    %106 = vmatpush.msra.mxu0 %v90
    %107 = vmatpush.msra.mxu0 %v89
    %108 = vmatpush.msra.mxu0 %v88
    %109 = vmatpush.msra.mxu0 %v87
    %110 = vmatpush.msra.mxu0 %v86
    %111 = vmatpush.msra.mxu0 %v85
    %112 = vmatpush.msra.mxu0 %v84
    %113 = vmatpush.msra.mxu0 %v83
    %114 = vmatpush.msra.mxu0 %v82
    %115 = vmatmul.f32.gmra.mxu0 %v81
    %v116 = vpop.f32.mrf.mxu0
    %v117 = vadd.f32 %v98, %v116
    %118 = vdwg.mxu0
    %v119 = vxor.u32 %v117, 2147483648
    %v120 = vmul.f32 %v119, 1.442695
    %v121 = vpow.pop %v120
    %v122 = vadd.f32 %v121, 1.0
    %v123 = vrcp.pop %v122
    %v124 = vmul.f32 %v122, %v123
    %v125 = vsub.f32 1.0, %v124
    %v126 = vmul.f32 %v123, %v125
    %v127 = vadd.f32 %v123, %v126
    %vm128 = vweird.f32 %v122
    %vm129 = vweird.f32 %v123
    %vm130 = vmor %vm128, %vm129
    %v131 = vsel %vm130, %v123, %v127
    %v132 = vand.u32 2147483647, %v122
    %vm133 = vcmp.eq.f32.partialorder %v132, 8.507059e+37
    %v134 = vand.u32 %v122, 2147483648
    %v135 = vor.u32 1.1754944e-38, %v134
    %v136 = vsel %vm133, %v135, %v131
    %v137 = vmul.f32 1.0, %v136
    %v138 = vtanh.pop %v117
    %139 = vrot.lane.b32.xlu0 %v138, 64
    %v140 = vpop.permute.xlu0 %139
    %141 = vrot.lane.b32.xlu0 %v137, 32
    %v142 = vpop.permute.xlu0 %141
    %v143 = vmul.f32 %v137, %v140
    %v144 = vtanh.pop %v143
    %v145 = vmul.f32 %v142, %v144
    %v146 = vld [vmem:[#allocation2 + $0xa0] sm:$0xff]
    %v147 = vld [vmem:[#allocation2 + $0xa8] sm:$0xff]
    %v148 = vld [vmem:[#allocation2 + $0xb0] sm:$0xff]
    %v149 = vld [vmem:[#allocation2 + $0xb8] sm:$0xff]
    %v150 = vld [vmem:[#allocation2 + $0xc0] sm:$0xff]
    %v151 = vld [vmem:[#allocation2 + $0xc8] sm:$0xff]
    %v152 = vld [vmem:[#allocation2 + $0xd0] sm:$0xff]
    %v153 = vld [vmem:[#allocation2 + $0xd8] sm:$0xff]
    %v154 = vld [vmem:[#allocation2 + $0xe0] sm:$0xff]
    %v155 = vld [vmem:[#allocation2 + $0xe8] sm:$0xff]
    %v156 = vld [vmem:[#allocation2 + $0xf0] sm:$0xff]
    %v157 = vld [vmem:[#allocation2 + $0xf8] sm:$0xff]
    %v158 = vld [vmem:[#allocation2 + $0x100] sm:$0xff]
    %v159 = vld [vmem:[#allocation2 + $0x108] sm:$0xff]
    %v160 = vld [vmem:[#allocation2 + $0x110] sm:$0xff]
    %v161 = vld [vmem:[#allocation2 + $0x118] sm:$0xff]
    %v162 = vld [vmem:[#allocation2 + $0x120] sm:$0xff]
    %163 = vmatpush.msra.mxu0 %v161
    %164 = vmatpush.msra.mxu0 %v160
    %165 = vmatpush.msra.mxu0 %v159
    %166 = vmatpush.msra.mxu0 %v158
    %167 = vmatpush.msra.mxu0 %v157
    %168 = vmatpush.msra.mxu0 %v156
    %169 = vmatpush.msra.mxu0 %v155
    %170 = vmatpush.msra.mxu0 %v154
    %171 = vmatpush.msra.mxu0 %v153
    %172 = vmatpush.msra.mxu0 %v152
    %173 = vmatpush.msra.mxu0 %v151
    %174 = vmatpush.msra.mxu0 %v150
    %175 = vmatpush.msra.mxu0 %v149
    %176 = vmatpush.msra.mxu0 %v148
    %177 = vmatpush.msra.mxu0 %v147
    %178 = vmatpush.msra.mxu0 %v146
    %179 = vmatmul.f32.gmra.mxu0 %v145
    %v180 = vpop.f32.mrf.mxu0
    %v181 = vadd.f32 %v162, %v180
    %182 = vdwg.mxu0
    %183 = vst [vmem:[%s2] sm:$0xff] %v181
    // Predicated region
    $region14: #{forward.1} parent=1 // pred_check
      _
    $region15: #{forward.1} parent=1 // pred_check_branch
      %185 = sbr.rel (0) target = $region17
    $region16: #{forward.1} parent=1 // pred_region
      _
    $region17: #{forward.1} parent=1 // pred_fallthru
      _
    // Predicated region
    $region18: #{forward.1} parent=1 // pred_check
      _
    $region19: #{forward.1} parent=1 // pred_check_branch
      %187 = sbr.rel (0) target = $region21
    $region20: #{forward.1} parent=1 // pred_region
      _
    $region21: #{forward.1} parent=1 // pred_fallthru
      _
    %188 = vsyncpa [#allocation3], 1

</llo_original>
